<compile_context>
chip_gen: v5e
topology: v5e:2x2
jax: 0.10.0
libtpu: 0.0.40
codegen_flags: <defaults>
</compile_context>

<pallas_src>
import functools

import jax
import jax.numpy as jnp
from jax.experimental import pallas as pl
from jax.experimental.pallas import tpu as pltpu

LN_EPS = 1e-5  # nn.LayerNorm default


def _round_up(n, m):
    return ((n + m - 1) // m) * m


def _spec(block_shape, index_map, n_buffers=None):
    """BlockSpec, optionally single/multi-buffered (graceful fallback)."""
    if n_buffers is not None and hasattr(pl, "Buffered"):
        try:
            return pl.BlockSpec(block_shape, index_map,
                                pipeline_mode=pl.Buffered(n_buffers))
        except TypeError:  # older JAX without pipeline_mode kwarg
            pass
    return pl.BlockSpec(block_shape, index_map)


def _vmem_ceiling_bytes():
    """Per-generation VMEM ceiling (physical minus headroom)."""
    try:
        cap = int(pltpu.get_tpu_info().vmem_capacity_bytes)  # 64 MiB v7x, 128 MiB v5e/v6e
        return max(cap * 7 // 8, 16 << 20)
    except Exception:
        return 56 << 20  # conservative: fits every generation


def _vmem_estimate(tb, tk, k_tiles, out_pad, x_isz, w_isz, o_isz):
    x_buf = 2 * tb * tk * x_isz                              # double-buffered x tile
    w_buf = (1 if k_tiles == 1 else 2) * tk * out_pad * w_isz
    o_buf = 2 * tb * out_pad * o_isz
    acc = tb * out_pad * 4                                   # f32 accumulator scratch
    consts = 3 * out_pad * 4                                 # bias / gamma / beta
    return x_buf + w_buf + o_buf + acc + consts


def mlp_block_kernel(x_ref, w_ref, b_ref, g_ref, be_ref, out_ref, acc_ref,
                     *, true_out_dim, out_pad, mxu_dtype, activation):
    """Grid (batch_tile, k_tile): accumulate x@W over K, then LN -> act -> store."""
    k = pl.program_id(1)

    @pl.when(k == 0)
    def _init():
        acc_ref[...] = jnp.zeros_like(acc_ref)

    # MXU matmul; W is already stored in the MXU dtype, only the x tile is cast.
    acc_ref[...] += jnp.dot(x_ref[...].astype(mxu_dtype), w_ref[...],
                            preferred_element_type=jnp.float32)

    @pl.when(k == pl.num_programs(1) - 1)
    def _epilogue():
        h = acc_ref[...] + b_ref[...]                       # (TB, out_pad) f32

        # LayerNorm over the true output_dim.  Padded columns of h are exactly
        # zero (zero-padded W / b), so the mean sum is already correct; the
        # centered term is masked so padded lanes don't bias the variance.
        inv_n = jnp.float32(1.0 / true_out_dim)
        mean = jnp.sum(h, axis=-1, keepdims=True) * inv_n
        centered = h - mean
        if true_out_dim != out_pad:
            lane = jax.lax.broadcasted_iota(jnp.int32, (1, out_pad), 1)
            centered = jnp.where(lane < true_out_dim, centered, 0.0)
        var = jnp.sum(centered * centered, axis=-1, keepdims=True) * inv_n
        h = centered * jax.lax.rsqrt(var + LN_EPS)
        h = h * g_ref[...] + be_ref[...]                    # padded gamma/beta are 0

        if activation == "relu":
            h = jnp.maximum(h, 0.0)
        elif activation == "gelu":
            h = jax.nn.gelu(h)
        elif activation != "identity":
            raise NotImplementedError(f"activation={activation!r}")
        # TODO(synk): nn.Dropout is identity at inference; training-mode dropout
        # (pltpu.prng_seed / prng_random_bits masking) is not implemented here.
        out_ref[...] = h.astype(out_ref.dtype)


def prepare_params(params, *, mxu_dtype=jnp.bfloat16, lane_multiple=128,
                   max_resident_w_bytes=24 << 20, k_block=512):
    """One-time parameter prep (outside the per-call hot path).

    Transposes W from PyTorch (out, in) to (in, out), zero-pads the output dim
    to a lane-dense multiple of `lane_multiple`, pre-casts W to the MXU dtype,
    and decides whether W stays fully VMEM-resident (tk = in_dim) or is
    streamed over a K-reduction grid axis (tk = k_block, in_dim zero-padded).
    """
    w, b, g, be = params["w"], params["b"], params["g"], params["be"]
    out_dim, in_dim = w.shape
    out_pad = _round_up(out_dim, lane_multiple)
    pad = out_pad - out_dim

    w_t = jnp.pad(w.T, ((0, 0), (0, pad)))                  # (in_dim, out_pad)
    w_isz = jnp.dtype(mxu_dtype).itemsize
    if in_dim * out_pad * w_isz <= max_resident_w_bytes:
        tk, k_pad = in_dim, in_dim                          # fully resident weight
    else:
        tk = k_block                                        # stream W over K axis
        k_pad = _round_up(in_dim, tk)
        w_t = jnp.pad(w_t, ((0, k_pad - in_dim), (0, 0)))
    w_t = w_t.astype(mxu_dtype)

    return {
        "w_t": w_t,                                         # (k_pad, out_pad) mxu_dtype
        "b": jnp.pad(b, (0, pad)).reshape(1, out_pad).astype(jnp.float32),
        "g": jnp.pad(g, (0, pad)).reshape(1, out_pad).astype(jnp.float32),
        "be": jnp.pad(be, (0, pad)).reshape(1, out_pad).astype(jnp.float32),
        "out_dim": out_dim, "out_pad": out_pad,
        "in_dim": in_dim, "k_pad": k_pad, "tk": tk,
        "mxu_dtype": mxu_dtype,
    }


def mlp_block_forward(x, prepped, *, block_rows=512, out_dtype=jnp.bfloat16,
                      activation="relu"):
    """x: (B, input_dim) f32.  prepped: output of prepare_params."""
    w_t, b, g, be = prepped["w_t"], prepped["b"], prepped["g"], prepped["be"]
    out_dim, out_pad = prepped["out_dim"], prepped["out_pad"]
    in_dim, k_pad, tk = prepped["in_dim"], prepped["k_pad"], prepped["tk"]
    mxu_dtype = prepped["mxu_dtype"]

    B, xin = x.shape
    assert xin == in_dim, (xin, in_dim)
    k_tiles = k_pad // tk
    if k_pad != in_dim:                                     # zero-pad the K axis
        x = jnp.pad(x, ((0, 0), (0, k_pad - in_dim)))

    x_isz = jnp.dtype(x.dtype).itemsize
    w_isz = jnp.dtype(mxu_dtype).itemsize
    o_isz = jnp.dtype(out_dtype).itemsize

    ceiling = _vmem_ceiling_bytes()
    budget = ceiling - (4 << 20)

    # Batch tile: multiple of 8 sublanes, default 512 rows (MXU-friendly),
    # shrunk only if the VMEM estimate exceeds the per-generation budget.
    tb = min(block_rows, _round_up(B, 8))
    while tb > 8 and _vmem_estimate(tb, tk, k_tiles, out_pad,
                                    x_isz, w_isz, o_isz) > budget:
        tb = max(8, _round_up(tb // 2, 8))

    # >=2 batch grid steps so ("parallel", ...) can shard across v7x's 2 cores.
    if _round_up(B, tb) // tb < 2 and tb > 8:
        tb = max(8, _round_up((B + 1) // 2, 8))

    b_pad = _round_up(B, tb)
    if b_pad != B:
        x = jnp.pad(x, ((0, b_pad - B), (0, 0)))

    est = _vmem_estimate(tb, tk, k_tiles, out_pad, x_isz, w_isz, o_isz)
    vmem_limit = int(min(ceiling, max(16 << 20, est * 3 // 2 + (2 << 20))))

    kernel = functools.partial(mlp_block_kernel, true_out_dim=out_dim,
                               out_pad=out_pad, mxu_dtype=mxu_dtype,
                               activation=activation)

    # Constant-index operands only need a single VMEM buffer.
    w_buffers = 1 if k_tiles == 1 else None

    y = pl.pallas_call(
        kernel,
        grid=(b_pad // tb, k_tiles),
        in_specs=[
            pl.BlockSpec((tb, tk), lambda i, k: (i, k)),              # x: stream rows & K
            _spec((tk, out_pad), lambda i, k: (k, 0), w_buffers),     # W (pre-cast)
            _spec((1, out_pad), lambda i, k: (0, 0), 1),              # bias
            _spec((1, out_pad), lambda i, k: (0, 0), 1),              # LN gamma
            _spec((1, out_pad), lambda i, k: (0, 0), 1),              # LN beta
        ],
        out_specs=pl.BlockSpec((tb, out_pad), lambda i, k: (i, 0)),   # lane-dense out
        out_shape=jax.ShapeDtypeStruct((b_pad, out_pad), out_dtype),
        scratch_shapes=[pltpu.VMEM((tb, out_pad), jnp.float32)],      # f32 accumulator
        compiler_params=pltpu.CompilerParams(
            dimension_semantics=("parallel", "arbitrary"),
            vmem_limit_bytes=vmem_limit,
        ),
    )(x, w_t, b, g, be)

    if b_pad == B and out_pad == out_dim:                   # no padding -> no extra copy
        return y
    return y[:B, :out_dim]


def mlp_block_reference(x, params, mxu_dtype=None):
    """Plain-JAX reference (PyTorch MLPBlock eval forward, ReLU activation)."""
    w, b, g, be = params["w"], params["b"], params["g"], params["be"]
    if mxu_dtype is None:
        h = x @ w.T + b
    else:  # emulate the kernel's low-precision MXU inputs with f32 accumulation
        h = jnp.dot(x.astype(mxu_dtype), w.T.astype(mxu_dtype),
                    preferred_element_type=jnp.float32) + b
    mean = jnp.mean(h, axis=-1, keepdims=True)
    var = jnp.mean((h - mean) ** 2, axis=-1, keepdims=True)
    h = (h - mean) * jax.lax.rsqrt(var + LN_EPS)
    h = h * g + be
    return jnp.maximum(h, 0.0)


def init_params(key, input_dim, output_dim):
    kw, kb = jax.random.split(key)
    bound = 1.0 / (input_dim ** 0.5)
    return {
        "w": jax.random.uniform(kw, (output_dim, input_dim), jnp.float32, -bound, bound),
        "b": jax.random.uniform(kb, (output_dim,), jnp.float32, -bound, bound),
        "g": jnp.ones((output_dim,), jnp.float32),    # LayerNorm weight
        "be": jnp.zeros((output_dim,), jnp.float32),  # LayerNorm bias
    }


if __name__ == "__main__":
    # MLPBlock(input_dim=32, output_dim=16, activation="relu", dropout_rate=0.1), eval mode.
    B, input_dim, output_dim = 8, 32, 16

    key = jax.random.PRNGKey(0)
    kx, kp, kx2, kp2 = jax.random.split(key, 4)
    x = jax.random.normal(kx, (B, input_dim), jnp.float32)
    params = init_params(kp, input_dim, output_dim)

    # 1) f32 MXU + f32 output: must match the f32 reference tightly.
    prepped_f32 = prepare_params(params, mxu_dtype=jnp.float32)
    y_f32 = jax.block_until_ready(
        mlp_block_forward(x, prepped_f32, out_dtype=jnp.float32))
    assert y_f32.shape == (B, output_dim)
    ref_f32 = mlp_block_reference(x, params)
    assert jnp.allclose(y_f32, ref_f32, atol=1e-4, rtol=1e-4), \
        "f32 kernel vs f32 reference mismatch"

    # 2) Default fast path: bf16 weights, bf16 output store.
    prepped = prepare_params(params)
    y_bf16 = jax.block_until_ready(mlp_block_forward(x, prepped))
    assert y_bf16.shape == (B, output_dim) and y_bf16.dtype == jnp.bfloat16
    ref_bf16 = mlp_block_reference(x, params, mxu_dtype=jnp.bfloat16)
    y_bf16_f = y_bf16.astype(jnp.float32)
    assert jnp.allclose(y_bf16_f, ref_bf16, atol=5e-2, rtol=5e-2), \
        "bf16 kernel vs bf16 reference mismatch"
    assert jnp.allclose(y_bf16_f, ref_f32, atol=1e-1, rtol=1e-1), \
        "bf16 kernel sanity check vs f32 reference failed"

    # 3) K-tiled path (weight streamed over a reduction grid axis), forced small.
    B2, in2, out2 = 48, 256, 40
    x2 = jax.random.normal(kx2, (B2, in2), jnp.float32)
    params2 = init_params(kp2, in2, out2)
    prepped2 = prepare_params(params2, mxu_dtype=jnp.float32,
                              max_resident_w_bytes=1, k_block=128)
    assert prepped2["tk"] == 128 and prepped2["k_pad"] == 256
    y2 = jax.block_until_ready(
        mlp_block_forward(x2, prepped2, out_dtype=jnp.float32))
    assert y2.shape == (B2, out2)
    ref2 = mlp_block_reference(x2, params2)
    assert jnp.allclose(y2, ref2, atol=1e-3, rtol=1e-3), \
        "K-tiled kernel vs f32 reference mismatch"

    print("KERNEL_OK")
</pallas_src>

<mosaic_0001>
module attributes {stable_mosaic.version = 11 : i64} {
  func.func @mlp_block_kernel(%arg0: i32, %arg1: i32, %arg2: memref<8x32xf32, #tpu.memory_space<vmem>>, %arg3: memref<32x128xf32, #tpu.memory_space<vmem>>, %arg4: memref<1x128xf32, #tpu.memory_space<vmem>>, %arg5: memref<1x128xf32, #tpu.memory_space<vmem>>, %arg6: memref<1x128xf32, #tpu.memory_space<vmem>>, %arg7: memref<8x128xf32, #tpu.memory_space<vmem>>, %arg8: memref<8x128xf32, #tpu.memory_space<vmem>>) attributes {dimension_semantics = [#tpu.dimension_semantics<parallel>, #tpu.dimension_semantics<arbitrary>], iteration_bounds = array<i64: 1, 1>, scalar_prefetch = 0 : i64, scratch_operands = 1 : i64, tpu.core_type = #tpu.core_type<tc>, window_params = [{transform_indices = @transform_0, window_bounds = array<i64: 8, 32>}, {pipeline_mode = #tpu.pipeline_mode<synchronous>, transform_indices = @transform_1, window_bounds = array<i64: 32, 128>}, {pipeline_mode = #tpu.pipeline_mode<synchronous>, transform_indices = @transform_2, window_bounds = array<i64: 1, 128>}, {pipeline_mode = #tpu.pipeline_mode<synchronous>, transform_indices = @transform_3, window_bounds = array<i64: 1, 128>}, {pipeline_mode = #tpu.pipeline_mode<synchronous>, transform_indices = @transform_4, window_bounds = array<i64: 1, 128>}, {transform_indices = @transform_5, window_bounds = array<i64: 8, 128>}]} {
    %c0_i32 = arith.constant 0 : i32
    %0 = arith.cmpi eq, %arg1, %c0_i32 : i32
    %1 = arith.extui %0 : i1 to i32
    %c0_i32_0 = arith.constant 0 : i32
    %2 = arith.cmpi ne, %1, %c0_i32_0 : i32
    scf.if %2 {
      %cst_10 = arith.constant 0.000000e+00 : f32
      %12 = vector.broadcast %cst_10 : f32 to vector<8x128xf32>
      %c0_11 = arith.constant 0 : index
      %c0_12 = arith.constant 0 : index
      %13 = vector.load %arg8[%c0_11, %c0_12] : memref<8x128xf32, #tpu.memory_space<vmem>>, vector<8x128xf32>
      tpu.vector_store %arg8[%c0_11, %c0_12], %12 {strides = array<i32>} : memref<8x128xf32, #tpu.memory_space<vmem>>, vector<8x128xf32>,
    } else {
    }
    %c0 = arith.constant 0 : index
    %c0_1 = arith.constant 0 : index
    %3 = vector.load %arg8[%c0, %c0_1] : memref<8x128xf32, #tpu.memory_space<vmem>>, vector<8x128xf32>
    %c0_2 = arith.constant 0 : index
    %c0_3 = arith.constant 0 : index
    %4 = vector.load %arg2[%c0_2, %c0_3] : memref<8x32xf32, #tpu.memory_space<vmem>>, vector<8x32xf32>
    %c0_4 = arith.constant 0 : index
    %c0_5 = arith.constant 0 : index
    %5 = vector.load %arg3[%c0_4, %c0_5] : memref<32x128xf32, #tpu.memory_space<vmem>>, vector<32x128xf32>
    %cst = arith.constant dense<0.000000e+00> : vector<8x128xf32>
    %6 = tpu.matmul %4, %5, %cst {dimension_numbers = #tpu.dot_dimension_numbers<[1], [0], [0], [1], [0, 0, 1, 1], [], []>} : vector<8x32xf32>, vector<32x128xf32>, vector<8x128xf32> -> vector<8x128xf32>
    %7 = arith.addf %3, %6 : vector<8x128xf32>
    %c0_6 = arith.constant 0 : index
    %c0_7 = arith.constant 0 : index
    %8 = vector.load %arg8[%c0_6, %c0_7] : memref<8x128xf32, #tpu.memory_space<vmem>>, vector<8x128xf32>
    tpu.vector_store %arg8[%c0_6, %c0_7], %7 {strides = array<i32>} : memref<8x128xf32, #tpu.memory_space<vmem>>, vector<8x128xf32>,
    %c0_i32_8 = arith.constant 0 : i32
    %9 = arith.cmpi eq, %arg1, %c0_i32_8 : i32
    %10 = arith.extui %9 : i1 to i32
    %c0_i32_9 = arith.constant 0 : i32
    %11 = arith.cmpi ne, %10, %c0_i32_9 : i32
    scf.if %11 {
      %c0_10 = arith.constant 0 : index
      %c0_11 = arith.constant 0 : index
      %12 = vector.load %arg8[%c0_10, %c0_11] : memref<8x128xf32, #tpu.memory_space<vmem>>, vector<8x128xf32>
      %c0_12 = arith.constant 0 : index
      %c0_13 = arith.constant 0 : index
      %13 = vector.load %arg4[%c0_12, %c0_13] : memref<1x128xf32, #tpu.memory_space<vmem>>, vector<1x128xf32>
      %14 = vector.broadcast %13 : vector<1x128xf32> to vector<8x128xf32>
      %15 = arith.addf %12, %14 : vector<8x128xf32>
      %cst_14 = arith.constant dense<0.000000e+00> : vector<8xf32>
      %16 = vector.multi_reduction <add>, %15, %cst_14 [1] : vector<8x128xf32> to vector<8xf32>
      %17 = vector.shape_cast %16 : vector<8xf32> to vector<8x1xf32>
      %cst_15 = arith.constant 6.250000e-02 : f32
      %18 = vector.broadcast %cst_15 : f32 to vector<8x1xf32>
      %19 = arith.mulf %17, %18 : vector<8x1xf32>
      %20 = vector.broadcast %19 : vector<8x1xf32> to vector<8x128xf32>
      %21 = arith.subf %15, %20 : vector<8x128xf32>
      %22 = tpu.iota {dimensions = array<i32: 1>} : vector<1x128xi32>
      %c16_i32 = arith.constant 16 : i32
      %23 = vector.broadcast %c16_i32 : i32 to vector<1x128xi32>
      %24 = arith.cmpi slt, %22, %23 : vector<1x128xi32>
      %cst_16 = arith.constant 0.000000e+00 : f32
      %25 = vector.shape_cast %24 : vector<1x128xi1> to vector<1x128xi1>
      %26 = vector.broadcast %25 : vector<1x128xi1> to vector<8x128xi1>
      %27 = vector.broadcast %cst_16 : f32 to vector<8x128xf32>
      %28 = arith.select %26, %21, %27 : vector<8x128xi1>, vector<8x128xf32>
      %29 = arith.mulf %28, %28 : vector<8x128xf32>
      %cst_17 = arith.constant dense<0.000000e+00> : vector<8xf32>
      %30 = vector.multi_reduction <add>, %29, %cst_17 [1] : vector<8x128xf32> to vector<8xf32>
      %31 = vector.shape_cast %30 : vector<8xf32> to vector<8x1xf32>
      %cst_18 = arith.constant 6.250000e-02 : f32
      %32 = vector.broadcast %cst_18 : f32 to vector<8x1xf32>
      %33 = arith.mulf %31, %32 : vector<8x1xf32>
      %cst_19 = arith.constant 9.99999974E-6 : f32
      %34 = vector.broadcast %cst_19 : f32 to vector<8x1xf32>
      %35 = arith.addf %33, %34 : vector<8x1xf32>
      %36 = math.rsqrt %35 : vector<8x1xf32>
      %37 = vector.broadcast %36 : vector<8x1xf32> to vector<8x128xf32>
      %38 = arith.mulf %28, %37 : vector<8x128xf32>
      %c0_20 = arith.constant 0 : index
      %c0_21 = arith.constant 0 : index
      %39 = vector.load %arg5[%c0_20, %c0_21] : memref<1x128xf32, #tpu.memory_space<vmem>>, vector<1x128xf32>
      %40 = vector.broadcast %39 : vector<1x128xf32> to vector<8x128xf32>
      %41 = arith.mulf %38, %40 : vector<8x128xf32>
      %c0_22 = arith.constant 0 : index
      %c0_23 = arith.constant 0 : index
      %42 = vector.load %arg6[%c0_22, %c0_23] : memref<1x128xf32, #tpu.memory_space<vmem>>, vector<1x128xf32>
      %43 = vector.broadcast %42 : vector<1x128xf32> to vector<8x128xf32>
      %44 = arith.addf %41, %43 : vector<8x128xf32>
      %cst_24 = arith.constant 0.000000e+00 : f32
      %45 = vector.broadcast %cst_24 : f32 to vector<8x128xf32>
      %46 = arith.maximumf %44, %45 : vector<8x128xf32>
      %c0_25 = arith.constant 0 : index
      %c0_26 = arith.constant 0 : index
      %47 = vector.load %arg7[%c0_25, %c0_26] : memref<8x128xf32, #tpu.memory_space<vmem>>, vector<8x128xf32>
      tpu.vector_store %arg7[%c0_25, %c0_26], %46 {strides = array<i32>} : memref<8x128xf32, #tpu.memory_space<vmem>>, vector<8x128xf32>,
    } else {
    }
    return
  }
  func.func @transform_0(%arg0: i32, %arg1: i32) -> (i32, i32) {
    %c0_i32 = arith.constant 0 : i32
    return %arg0, %arg1 : i32, i32
  }
  func.func @transform_1(%arg0: i32, %arg1: i32) -> (i32, i32) {
    %c0_i32 = arith.constant 0 : i32
    %c0_i32_0 = arith.constant 0 : i32
    return %arg1, %c0_i32 : i32, i32
  }
  func.func @transform_2(%arg0: i32, %arg1: i32) -> (i32, i32) {
    %c0_i32 = arith.constant 0 : i32
    %c0_i32_0 = arith.constant 0 : i32
    %c0_i32_1 = arith.constant 0 : i32
    return %c0_i32, %c0_i32_0 : i32, i32
  }
  func.func @transform_3(%arg0: i32, %arg1: i32) -> (i32, i32) {
    %c0_i32 = arith.constant 0 : i32
    %c0_i32_0 = arith.constant 0 : i32
    %c0_i32_1 = arith.constant 0 : i32
    return %c0_i32, %c0_i32_0 : i32, i32
  }
  func.func @transform_4(%arg0: i32, %arg1: i32) -> (i32, i32) {
    %c0_i32 = arith.constant 0 : i32
    %c0_i32_0 = arith.constant 0 : i32
    %c0_i32_1 = arith.constant 0 : i32
    return %c0_i32, %c0_i32_0 : i32, i32
  }
  func.func @transform_5(%arg0: i32, %arg1: i32) -> (i32, i32) {
    %c0_i32 = arith.constant 0 : i32
    %c0_i32_0 = arith.constant 0 : i32
    return %arg0, %c0_i32 : i32, i32
  }
}

</mosaic_0001>

<llo_original>
// kernel: tpu_custom_call.1
$region0: #{tpu_custom_call.1}
  #allocation0 [shape = 'u32[]', space=smem, size = 0x4, offset = 0x4, fixed_abs, tag = 'smem constant byte address 0x4 - core index']
  #allocation1 [shape = 'u32[72,128]{1,0:T(1,128)}', space=vmem, size = 0x9000, scoped, tag = 'internal scratch']
  #allocation2 [shape = 'f32[8,128]{1,0:T(8,128)}', space=vmem, size = 0x1000, scoped, tag = 'scratch operand']
  %s0 = inlined_call_operand.hbm [shape: f32[8,32], index: 0, kind: input, shape index: {}]
  %s1 = inlined_call_operand.hbm [shape: f32[32,128], index: 1, kind: input, shape index: {}]
  %s2 = inlined_call_operand.vmem [shape: f32[1,128], index: 2, kind: input, shape index: {}]
  %s3 = inlined_call_operand.vmem [shape: f32[1,128], index: 3, kind: input, shape index: {}]
  %s4 = inlined_call_operand.vmem [shape: f32[1,128], index: 4, kind: input, shape index: {}]
  %s5 = inlined_call_operand.hbm [shape: f32[8,128], index: 5, kind: output, shape index: {}]
  %s6 = sld [smem:[#allocation0]]
  $region46: #{tpu_custom_call.1} parent=0
    _
  %s8 = ssub.s32 1, %s6
  %s9 = scalar_select 0, %s8, %s6
  $region1: #{tpu_custom_call.1} parent=0
    #allocation3 [shape = 'u8[4096]{0}', space=vmem, size = 0x1000, scoped, tag = 'input window, operand 0, single buffered']
    #allocation4 [shape = 's32[1]{0}', space=sflag, size = 0x4, scoped, tag = 'scoped memory for tpu_custom_call.1']
    #allocation5 [shape = 's32[1]{0}', space=sflag, size = 0x4, scoped, tag = 'scoped memory for tpu_custom_call.1']
    #allocation6 [shape = 'u8[16384]{0}', space=vmem, size = 0x4000, scoped, tag = 'input window, operand 1, single buffered']
    #allocation7 [shape = 's32[1]{0}', space=sflag, size = 0x4, scoped, tag = 'scoped memory for tpu_custom_call.1']
    #allocation8 [shape = 'u8[4096]{0}', space=vmem, size = 0x1000, scoped, tag = 'output window, operand 0, single buffered']
    %10 = vsyncpa [#allocation4], 0
    %11 = vsyncpa [#allocation7], 0
    %12 = vsyncpa [#allocation5], 0
    // Predicated region
    $region2: #{tpu_custom_call.1} parent=1 // pred_check
      _
    $region3: #{tpu_custom_call.1} parent=1 // pred_check_branch
      %14 = sbr.rel (0) target = $region5
    $region4: #{tpu_custom_call.1} parent=1 // pred_region
      %16 = vsyncadd [#allocation4], 0
      %s18 = sshll.u32 %s0, 4
      %s19 = int_to_ptr.hbm [resolvable:$true] %s18
      %s20 = sshll.u32 [#allocation3], 4
      %s21 = int_to_ptr.vmem [resolvable:$true] %s20
      %23 = dma.hbm_to_vmem [thread:$0]  %s19, 128, %s21, [#allocation4]
    $region5: #{tpu_custom_call.1} parent=1 // pred_fallthru
      _
    // Predicated region
    $region6: #{tpu_custom_call.1} parent=1 // pred_check
      _
    $region7: #{tpu_custom_call.1} parent=1 // pred_check_branch
      %25 = sbr.rel (0) target = $region9
    $region8: #{tpu_custom_call.1} parent=1 // pred_region
      %27 = vsyncadd [#allocation7], 0
      %s28 = sshll.u32 %s1, 4
      %s29 = int_to_ptr.hbm [resolvable:$true] %s28
      %s30 = sshll.u32 [#allocation6], 4
      %s31 = int_to_ptr.vmem [resolvable:$true] %s30
      %36 = dma.hbm_to_vmem [thread:$0]  %s29, 512, %s31, [#allocation7], 128, 128, 8
    $region9: #{tpu_custom_call.1} parent=1 // pred_fallthru
      _
    // Predicated region
    $region10: #{tpu_custom_call.1} parent=1 // pred_check
      _
    $region11: #{tpu_custom_call.1} parent=1 // pred_check_branch
      %38 = sbr.rel (0) target = $region13
    $region12: #{tpu_custom_call.1} parent=1 // pred_region
      _
    $region13: #{tpu_custom_call.1} parent=1 // pred_fallthru
      _
    // Predicated region
    $region14: #{tpu_custom_call.1} parent=1 // pred_check
      _
    $region15: #{tpu_custom_call.1} parent=1 // pred_check_branch
      %40 = sbr.rel (0) target = $region17
    $region16: #{tpu_custom_call.1} parent=1 // pred_region
      _
    $region17: #{tpu_custom_call.1} parent=1 // pred_fallthru
      _
    // Predicated region
    $region18: #{tpu_custom_call.1} parent=1 // pred_check
      _
    $region19: #{tpu_custom_call.1} parent=1 // pred_check_branch
      %42 = sbr.rel (0) target = $region21
    $region20: #{tpu_custom_call.1} parent=1 // pred_region
      _
    $region21: #{tpu_custom_call.1} parent=1 // pred_fallthru
      _
    // Predicated region
    $region22: #{tpu_custom_call.1} parent=1 // pred_check
      _
    $region23: #{tpu_custom_call.1} parent=1 // pred_check_branch
      %44 = sbr.rel (0) target = $region25
    $region24: #{tpu_custom_call.1} parent=1 // pred_region
      %46 = dma.done [#allocation4], 128
    $region25: #{tpu_custom_call.1} parent=1 // pred_fallthru
      _
    // Predicated region
    $region26: #{tpu_custom_call.1} parent=1 // pred_check
      _
    $region27: #{tpu_custom_call.1} parent=1 // pred_check_branch
      %48 = sbr.rel (0) target = $region29
    $region28: #{tpu_custom_call.1} parent=1 // pred_region
      %50 = dma.done [#allocation7], 512
    $region29: #{tpu_custom_call.1} parent=1 // pred_fallthru
      _
    %p51 = scmp.eq.s32.totalorder 0, 0
    // Predicated region
    $region30: #{tpu_custom_call.1} parent=1 // pred_check
      %p52 = pneg %p51
    $region31: #{tpu_custom_call.1} parent=1 // pred_check_branch
      %54 = sbr.rel (%p52) target = $region33
    $region32: #{tpu_custom_call.1} parent=1 // pred_region
      %55 = vst [vmem:[#allocation2] sm:$0xff] 0.0
    $region33: #{tpu_custom_call.1} parent=1 // pred_fallthru
      _
    %v56 = vld [vmem:[#allocation2] sm:$0xff]
    %v57 = vld [vmem:[#allocation3] sm:$0xff]
    %v58 = vld [vmem:[#allocation6] sm:$0xff]
    %v59 = vld [vmem:[#allocation6 + $0x8] sm:$0xff]
    %v60 = vld [vmem:[#allocation6 + $0x10] sm:$0xff]
    %v61 = vld [vmem:[#allocation6 + $0x18] sm:$0xff]
    %vm62 = vcmask 261120
    %v64 = vsel %vm62, %v57, 0
    %66 = vmatpush.msra.mxu0 0.0
    %67 = vmatpush.msra.mxu0 0.0
    %68 = vmatpush.msra.mxu0 0.0
    %69 = vmatpush.msra.mxu0 0.0
    %70 = vmatpush.msra.mxu0 0.0
    %71 = vmatpush.msra.mxu0 0.0
    %72 = vmatpush.msra.mxu0 0.0
    %73 = vmatpush.msra.mxu0 0.0
    %74 = vmatpush.msra.mxu0 0.0
    %75 = vmatpush.msra.mxu0 0.0
    %76 = vmatpush.msra.mxu0 0.0
    %77 = vmatpush.msra.mxu0 0.0
    %78 = vmatpush.msra.mxu0 %v61
    %79 = vmatpush.msra.mxu0 %v60
    %80 = vmatpush.msra.mxu0 %v59
    %81 = vmatpush.msra.mxu0 %v58
    %82 = vmatmul.f32.gmra.mxu0 %v64
    %v83 = vpop.f32.mrf.mxu0
    %v84 = vadd.f32 0.0, %v83
    %85 = vdwg.mxu0
    %v86 = vadd.f32 %v56, %v84
    %87 = vst [vmem:[#allocation2] sm:$0xff] %v86
    // Predicated region
    $region34: #{tpu_custom_call.1} parent=1 // pred_check
      %p88 = pneg %p51
    $region35: #{tpu_custom_call.1} parent=1 // pred_check_branch
      %90 = sbr.rel (%p88) target = $region37
    $region36: #{tpu_custom_call.1} parent=1 // pred_region
      %v91 = vld [vmem:[#allocation2] sm:$0xff]
      %v92 = vld [vmem:[%s2] sm:$0x1]
      %v94 = vperm.slane %v92, 0
      %v96 = vadd.f32 %v91, %v94
      %97 = vadd.xlane.f32.xlu0 %v96
      %v98 = vpop.xlane.xlu0 %97
      %v99 = vmul.f32 %v98, 0.0625
      %v100 = vsub.f32 %v96, %v99
      %v101 = vlaneseq
      %v102 = vand.u32 %v101, 127
      %vm103 = vcmp.lt.s32.totalorder %v102, 16
      %v104 = vsel %vm103, 1, 0
      %vm105 = vcmp.eq.s32.totalorder %v104, 1
      %v106 = vsel %vm105, %v100, 0.0
      %v107 = vmul.f32 %v106, %v106
      %108 = vadd.xlane.f32.xlu0 %v107
      %v109 = vpop.xlane.xlu0 %108
      %v110 = vmul.f32 %v109, 0.0625
      %v111 = vadd.f32 %v110, 1e-05
      %v112 = vrsqrt.pop %v111
      %v113 = vmul.f32 %v112, %v111
      %v114 = vmul.f32 %v113, %v112
      %v115 = vmul.f32 0.5, %v114
      %v116 = vsub.f32 1.5, %v115
      %v117 = vmul.f32 %v112, %v116
      %vm118 = vweird.f32 %v111
      %vm119 = vweird.f32 %v112
      %vm120 = vmor %vm118, %vm119
      %v121 = vsel %vm120, %v112, %v117
      %v122 = vmul.f32 %v106, %v121
      %v123 = vld [vmem:[%s3] sm:$0x1]
      %v125 = vperm.slane %v123, 0
      %v127 = vmul.f32 %v122, %v125
      %v128 = vld [vmem:[%s4] sm:$0x1]
      %v130 = vperm.slane %v128, 0
      %v132 = vadd.f32 %v127, %v130
      %v133 = vmax.f32 %v132, 0.0
      %134 = vst [vmem:[#allocation8] sm:$0xff] %v133
    $region37: #{tpu_custom_call.1} parent=1 // pred_fallthru
      _
    // Predicated region
    $region38: #{tpu_custom_call.1} parent=1 // pred_check
      _
    $region39: #{tpu_custom_call.1} parent=1 // pred_check_branch
      %136 = sbr.rel (0) target = $region41
    $region40: #{tpu_custom_call.1} parent=1 // pred_region
      %138 = vsyncadd [#allocation5], 0
      %s140 = sshll.u32 [#allocation8], 4
      %s141 = int_to_ptr.vmem [resolvable:$true] %s140
      %s142 = sshll.u32 %s5, 4
      %s143 = int_to_ptr.hbm [resolvable:$true] %s142
      %145 = dma.vmem_to_hbm [thread:$0]  %s141, 128, %s143, [#allocation5]
    $region41: #{tpu_custom_call.1} parent=1 // pred_fallthru
      _
    // Predicated region
    $region42: #{tpu_custom_call.1} parent=1 // pred_check
      _
    $region43: #{tpu_custom_call.1} parent=1 // pred_check_branch
      %147 = sbr.rel (0) target = $region45
    $region44: #{tpu_custom_call.1} parent=1 // pred_region
      %149 = dma.done [#allocation5], 128
    $region45: #{tpu_custom_call.1} parent=1 // pred_fallthru
      _
    %150 = vsyncpa [#allocation4], 1
    %151 = vsyncpa [#allocation7], 1
    %152 = vsyncpa [#allocation5], 1

</llo_original>
